<compile_context>
chip_gen: v6e
topology: v6e:2x2x1
jax: 0.10.0
libtpu: 0.0.40
codegen_flags: <defaults>
</compile_context>

<pallas_src>
import functools

import jax
import jax.numpy as jnp
from jax.experimental import pallas as pl
from jax.experimental.pallas import tpu as pltpu

HIDDEN = 128
LANE = 128


def _round_up(n, m):
    return ((n + m - 1) // m) * m


def dqn_kernel(x_ref, w0_ref, b0_ref, w1_ref, b1_ref, w2_ref, b2_ref, o_ref):
    """Fused 3-layer MLP tile: relu(relu(x@W0+b0)@W1+b1)@W2+b2.

    x tile   : (TM, obs_dim) f32 (cast to bf16 in-kernel for the MXU)
    weights  : bf16, pinned in VMEM across grid steps (constant index_map)
    biases   : f32 (bias add + ReLU in f32; MXU accumulates in f32)
    output   : (TM, 128) bf16, lane-dense (action_dim zero-padded to 128 lanes)
    """
    x = x_ref[...].astype(w0_ref.dtype)                          # (TM, obs_dim) bf16
    h0 = jnp.dot(x, w0_ref[...], preferred_element_type=jnp.float32)
    h0 = jnp.maximum(h0 + b0_ref[...], 0.0)                      # (TM, 128) f32
    h1 = jnp.dot(h0.astype(w1_ref.dtype), w1_ref[...],
                 preferred_element_type=jnp.float32)
    h1 = jnp.maximum(h1 + b1_ref[...], 0.0)                      # (TM, 128) f32
    out = jnp.dot(h1.astype(w2_ref.dtype), w2_ref[...],
                  preferred_element_type=jnp.float32)
    o_ref[...] = (out + b2_ref[...]).astype(o_ref.dtype)         # (TM, 128) bf16


@functools.partial(jax.jit, static_argnames=("action_dim", "tm"))
def dqn_forward(x, kparams, *, action_dim, tm=2048):
    """x: (B, obs_dim) float32. kparams: kernel-ready params from prepare_params()."""
    B, obs_dim = x.shape
    w0, b0 = kparams["W0"], kparams["b0"]
    w1, b1 = kparams["W1"], kparams["b1"]
    w2, b2 = kparams["W2"], kparams["b2"]
    n_pad = w2.shape[1]                                  # lane-dense output width

    # Batch tile: multiple of 128 rows, capped at `tm`; force >= 2 grid steps
    # once B >= 256 so the "parallel" axis shards across TCs on v7x.
    TM = min(tm, _round_up(max(B, 1), LANE))
    if B >= 2 * LANE:
        TM = min(TM, _round_up(pl.cdiv(B, 2), LANE))
    grid = (pl.cdiv(B, TM),)
    const = lambda i: (0, 0)                             # weights stay VMEM-resident

    flops = 2 * B * (obs_dim * HIDDEN + HIDDEN * HIDDEN + HIDDEN * n_pad)
    bytes_accessed = (
        B * obs_dim * 4                                  # f32 input
        + (w0.size + w1.size + w2.size) * 2              # bf16 weights
        + (b0.size + b1.size + b2.size) * 4              # f32 biases
        + B * n_pad * 2                                  # bf16 output
    )

    out = pl.pallas_call(
        dqn_kernel,
        out_shape=jax.ShapeDtypeStruct((B, n_pad), jnp.bfloat16),
        grid=grid,
        in_specs=[
            pl.BlockSpec((TM, obs_dim), lambda i: (i, 0)),   # x tile, pipelined
            pl.BlockSpec((obs_dim, HIDDEN), const),          # W0
            pl.BlockSpec((1, HIDDEN), const),                # b0
            pl.BlockSpec((HIDDEN, HIDDEN), const),           # W1
            pl.BlockSpec((1, HIDDEN), const),                # b1
            pl.BlockSpec((HIDDEN, n_pad), const),            # W2 (lane-padded)
            pl.BlockSpec((1, n_pad), const),                 # b2 (lane-padded)
        ],
        out_specs=pl.BlockSpec((TM, n_pad), lambda i: (i, 0)),
        compiler_params=pltpu.CompilerParams(
            dimension_semantics=("parallel",),        # shard batch across TCs on v7x
            vmem_limit_bytes=32 * 1024 * 1024,        # explicit: v5e default is 16 MiB
        ),
        cost_estimate=pl.CostEstimate(
            flops=flops, transcendentals=0, bytes_accessed=bytes_accessed),
    )(x, w0, b0, w1, b1, w2, b2)

    # Tiny post-slice: drop padded lanes, return f32 Q-values (module semantics).
    return out[:, :action_dim].astype(jnp.float32)


def prepare_params(params):
    """One-time formatting (do at init / checkpoint load, NOT per forward call):
    bf16 weights, f32 (1, out) biases, W2/b2 zero-padded to 128 output lanes."""
    action_dim = params["W2"].shape[1]
    n_pad = _round_up(action_dim, LANE)

    def as_bias(b):
        return jnp.asarray(b, jnp.float32).reshape(1, -1)

    kparams = {
        "W0": jnp.asarray(params["W0"], jnp.bfloat16),
        "b0": as_bias(params["b0"]),
        "W1": jnp.asarray(params["W1"], jnp.bfloat16),
        "b1": as_bias(params["b1"]),
        "W2": jnp.pad(jnp.asarray(params["W2"], jnp.float32),
                      ((0, 0), (0, n_pad - action_dim))).astype(jnp.bfloat16),
        "b2": jnp.pad(as_bias(params["b2"]), ((0, 0), (0, n_pad - action_dim))),
    }
    return kparams, action_dim


def init_params(key, obs_dim, action_dim):
    """Deterministic init mimicking nn.Linear (uniform +-1/sqrt(fan_in))."""
    ks = jax.random.split(key, 6)

    def linear(kw, kb, fan_in, fan_out):
        bound = 1.0 / jnp.sqrt(jnp.float32(fan_in))
        W = jax.random.uniform(kw, (fan_in, fan_out), jnp.float32, -bound, bound)
        b = jax.random.uniform(kb, (1, fan_out), jnp.float32, -bound, bound)
        return W, b

    W0, b0 = linear(ks[0], ks[1], obs_dim, HIDDEN)
    W1, b1 = linear(ks[2], ks[3], HIDDEN, HIDDEN)
    W2, b2 = linear(ks[4], ks[5], HIDDEN, action_dim)
    return {"W0": W0, "b0": b0, "W1": W1, "b1": b1, "W2": W2, "b2": b2}


def reference_forward(x, p):
    h0 = jnp.maximum(x @ p["W0"] + p["b0"], 0.0)
    h1 = jnp.maximum(h0 @ p["W1"] + p["b1"], 0.0)
    return h1 @ p["W2"] + p["b2"]


if __name__ == "__main__":
    obs_dim, action_dim, batch = 16, 8, 8
    key = jax.random.PRNGKey(0)
    kx, kp = jax.random.split(key)
    x = jax.random.normal(kx, (batch, obs_dim), jnp.float32)
    params = init_params(kp, obs_dim, action_dim)
    kparams, adim = prepare_params(params)          # one-time weight formatting

    out = jax.block_until_ready(dqn_forward(x, kparams, action_dim=adim))
    ref = reference_forward(x, params)
    assert out.shape == (batch, action_dim)
    # bf16 weights/activations/output with f32 accumulation -> loose vs f32 ref.
    assert jnp.allclose(out, ref, atol=7.5e-2, rtol=7.5e-2)
    print("KERNEL_OK")
</pallas_src>

<mosaic_0001>
module attributes {stable_mosaic.version = 11 : i64} {
  func.func @dqn_kernel(%arg0: i32, %arg1: memref<128x16xf32, #tpu.memory_space<vmem>>, %arg2: memref<16x128xbf16, #tpu.memory_space<vmem>>, %arg3: memref<1x128xf32, #tpu.memory_space<vmem>>, %arg4: memref<128x128xbf16, #tpu.memory_space<vmem>>, %arg5: memref<1x128xf32, #tpu.memory_space<vmem>>, %arg6: memref<128x128xbf16, #tpu.memory_space<vmem>>, %arg7: memref<1x128xf32, #tpu.memory_space<vmem>>, %arg8: memref<128x128xbf16, #tpu.memory_space<vmem>>) attributes {dimension_semantics = [#tpu.dimension_semantics<parallel>], iteration_bounds = array<i64: 1>, scalar_prefetch = 0 : i64, scratch_operands = 0 : i64, tpu.core_type = #tpu.core_type<tc>, window_params = [{transform_indices = @transform_0, window_bounds = array<i64: 128, 16>}, {pipeline_mode = #tpu.pipeline_mode<synchronous>, transform_indices = @transform_1, window_bounds = array<i64: 16, 128>}, {pipeline_mode = #tpu.pipeline_mode<synchronous>, transform_indices = @transform_2, window_bounds = array<i64: 1, 128>}, {pipeline_mode = #tpu.pipeline_mode<synchronous>, transform_indices = @transform_3, window_bounds = array<i64: 128, 128>}, {pipeline_mode = #tpu.pipeline_mode<synchronous>, transform_indices = @transform_4, window_bounds = array<i64: 1, 128>}, {pipeline_mode = #tpu.pipeline_mode<synchronous>, transform_indices = @transform_5, window_bounds = array<i64: 128, 128>}, {pipeline_mode = #tpu.pipeline_mode<synchronous>, transform_indices = @transform_6, window_bounds = array<i64: 1, 128>}, {transform_indices = @transform_7, window_bounds = array<i64: 128, 128>}]} {
    %c0 = arith.constant 0 : index
    %c0_0 = arith.constant 0 : index
    %0 = vector.load %arg1[%c0, %c0_0] : memref<128x16xf32, #tpu.memory_space<vmem>>, vector<128x16xf32>
    %1 = arith.truncf %0 : vector<128x16xf32> to vector<128x16xbf16>
    %c0_1 = arith.constant 0 : index
    %c0_2 = arith.constant 0 : index
    %2 = vector.load %arg2[%c0_1, %c0_2] : memref<16x128xbf16, #tpu.memory_space<vmem>>, vector<16x128xbf16>
    %cst = arith.constant dense<0.000000e+00> : vector<128x128xf32>
    %3 = tpu.matmul %1, %2, %cst {dimension_numbers = #tpu.dot_dimension_numbers<[1], [0], [0], [1], [0, 0, 1, 1], [], []>} : vector<128x16xbf16>, vector<16x128xbf16>, vector<128x128xf32> -> vector<128x128xf32>
    %c0_3 = arith.constant 0 : index
    %c0_4 = arith.constant 0 : index
    %4 = vector.load %arg3[%c0_3, %c0_4] : memref<1x128xf32, #tpu.memory_space<vmem>>, vector<1x128xf32>
    %5 = vector.broadcast %4 : vector<1x128xf32> to vector<128x128xf32>
    %6 = arith.addf %3, %5 : vector<128x128xf32>
    %cst_5 = arith.constant 0.000000e+00 : f32
    %7 = vector.broadcast %cst_5 : f32 to vector<128x128xf32>
    %8 = arith.maximumf %6, %7 : vector<128x128xf32>
    %9 = arith.truncf %8 : vector<128x128xf32> to vector<128x128xbf16>
    %c0_6 = arith.constant 0 : index
    %c0_7 = arith.constant 0 : index
    %10 = vector.load %arg4[%c0_6, %c0_7] : memref<128x128xbf16, #tpu.memory_space<vmem>>, vector<128x128xbf16>
    %cst_8 = arith.constant dense<0.000000e+00> : vector<128x128xf32>
    %11 = tpu.matmul %9, %10, %cst_8 {dimension_numbers = #tpu.dot_dimension_numbers<[1], [0], [0], [1], [0, 0, 1, 1], [], []>} : vector<128x128xbf16>, vector<128x128xbf16>, vector<128x128xf32> -> vector<128x128xf32>
    %c0_9 = arith.constant 0 : index
    %c0_10 = arith.constant 0 : index
    %12 = vector.load %arg5[%c0_9, %c0_10] : memref<1x128xf32, #tpu.memory_space<vmem>>, vector<1x128xf32>
    %13 = vector.broadcast %12 : vector<1x128xf32> to vector<128x128xf32>
    %14 = arith.addf %11, %13 : vector<128x128xf32>
    %cst_11 = arith.constant 0.000000e+00 : f32
    %15 = vector.broadcast %cst_11 : f32 to vector<128x128xf32>
    %16 = arith.maximumf %14, %15 : vector<128x128xf32>
    %17 = arith.truncf %16 : vector<128x128xf32> to vector<128x128xbf16>
    %c0_12 = arith.constant 0 : index
    %c0_13 = arith.constant 0 : index
    %18 = vector.load %arg6[%c0_12, %c0_13] : memref<128x128xbf16, #tpu.memory_space<vmem>>, vector<128x128xbf16>
    %cst_14 = arith.constant dense<0.000000e+00> : vector<128x128xf32>
    %19 = tpu.matmul %17, %18, %cst_14 {dimension_numbers = #tpu.dot_dimension_numbers<[1], [0], [0], [1], [0, 0, 1, 1], [], []>} : vector<128x128xbf16>, vector<128x128xbf16>, vector<128x128xf32> -> vector<128x128xf32>
    %c0_15 = arith.constant 0 : index
    %c0_16 = arith.constant 0 : index
    %20 = vector.load %arg7[%c0_15, %c0_16] : memref<1x128xf32, #tpu.memory_space<vmem>>, vector<1x128xf32>
    %21 = vector.broadcast %20 : vector<1x128xf32> to vector<128x128xf32>
    %22 = arith.addf %19, %21 : vector<128x128xf32>
    %23 = arith.truncf %22 : vector<128x128xf32> to vector<128x128xbf16>
    %c0_17 = arith.constant 0 : index
    %c0_18 = arith.constant 0 : index
    %24 = vector.load %arg8[%c0_17, %c0_18] : memref<128x128xbf16, #tpu.memory_space<vmem>>, vector<128x128xbf16>
    tpu.vector_store %arg8[%c0_17, %c0_18], %23 {strides = array<i32>} : memref<128x128xbf16, #tpu.memory_space<vmem>>, vector<128x128xbf16>,
    return
  }
  func.func @transform_0(%arg0: i32) -> (i32, i32) {
    %c0_i32 = arith.constant 0 : i32
    %c0_i32_0 = arith.constant 0 : i32
    return %arg0, %c0_i32 : i32, i32
  }
  func.func @transform_1(%arg0: i32) -> (i32, i32) {
    %c0_i32 = arith.constant 0 : i32
    %c0_i32_0 = arith.constant 0 : i32
    %c0_i32_1 = arith.constant 0 : i32
    return %c0_i32, %c0_i32_0 : i32, i32
  }
  func.func @transform_2(%arg0: i32) -> (i32, i32) {
    %c0_i32 = arith.constant 0 : i32
    %c0_i32_0 = arith.constant 0 : i32
    %c0_i32_1 = arith.constant 0 : i32
    return %c0_i32, %c0_i32_0 : i32, i32
  }
  func.func @transform_3(%arg0: i32) -> (i32, i32) {
    %c0_i32 = arith.constant 0 : i32
    %c0_i32_0 = arith.constant 0 : i32
    %c0_i32_1 = arith.constant 0 : i32
    return %c0_i32, %c0_i32_0 : i32, i32
  }
  func.func @transform_4(%arg0: i32) -> (i32, i32) {
    %c0_i32 = arith.constant 0 : i32
    %c0_i32_0 = arith.constant 0 : i32
    %c0_i32_1 = arith.constant 0 : i32
    return %c0_i32, %c0_i32_0 : i32, i32
  }
  func.func @transform_5(%arg0: i32) -> (i32, i32) {
    %c0_i32 = arith.constant 0 : i32
    %c0_i32_0 = arith.constant 0 : i32
    %c0_i32_1 = arith.constant 0 : i32
    return %c0_i32, %c0_i32_0 : i32, i32
  }
  func.func @transform_6(%arg0: i32) -> (i32, i32) {
    %c0_i32 = arith.constant 0 : i32
    %c0_i32_0 = arith.constant 0 : i32
    %c0_i32_1 = arith.constant 0 : i32
    return %c0_i32, %c0_i32_0 : i32, i32
  }
  func.func @transform_7(%arg0: i32) -> (i32, i32) {
    %c0_i32 = arith.constant 0 : i32
    %c0_i32_0 = arith.constant 0 : i32
    return %arg0, %c0_i32 : i32, i32
  }
}

</mosaic_0001>

<llo_original>
// kernel: dqn_forward.1
$region0: #{dqn_forward.1}
  #allocation0 [shape = 'u32[]', space=smem, size = 0x4, offset = 0x4, fixed_abs, tag = 'smem constant byte address 0x4 - core index']
  #allocation1 [shape = 'u32[144,128]{1,0:T(1,128)}', space=vmem, size = 0x12000, scoped, tag = 'internal scratch']
  %s0 = inlined_call_operand.hbm [shape: f32[8,16], index: 0, kind: input, shape index: {}]
  %s1 = inlined_call_operand.hbm [shape: bf16[16,128], index: 1, kind: input, shape index: {}]
  %s2 = inlined_call_operand.vmem [shape: f32[1,128], index: 2, kind: input, shape index: {}]
  %s3 = inlined_call_operand.hbm [shape: bf16[128,128], index: 3, kind: input, shape index: {}]
  %s4 = inlined_call_operand.vmem [shape: f32[1,128], index: 4, kind: input, shape index: {}]
  %s5 = inlined_call_operand.hbm [shape: bf16[128,128], index: 5, kind: input, shape index: {}]
  %s6 = inlined_call_operand.vmem [shape: f32[1,128], index: 6, kind: input, shape index: {}]
  %s7 = inlined_call_operand.vmem [shape: bf16[8,128], index: 7, kind: output, shape index: {}]
  %s8 = sld [smem:[#allocation0]]
  $region84: #{dqn_forward.1} parent=0
    _
  %s10 = ssub.s32 1, %s8
  %s11 = scalar_select 0, %s10, %s8
  $region1: #{dqn_forward.1} parent=0
    #allocation2 [shape = 'u8[65536]{0}', space=vmem, size = 0x10000, scoped, tag = 'input window, operand 0, single buffered']
    #allocation3 [shape = 's32[1]{0}', space=sflag, size = 0x4, scoped, tag = 'scoped memory for dqn_forward.1']
    #allocation4 [shape = 'u8[4096]{0}', space=vmem, size = 0x1000, scoped, tag = 'input window, operand 1, single buffered']
    #allocation5 [shape = 's32[1]{0}', space=sflag, size = 0x4, scoped, tag = 'scoped memory for dqn_forward.1']
    #allocation6 [shape = 'u8[32768]{0}', space=vmem, size = 0x8000, scoped, tag = 'input window, operand 3, single buffered']
    #allocation7 [shape = 'u8[32768]{0}', space=vmem, size = 0x8000, scoped, tag = 'input window, operand 5, single buffered']
    #allocation8 [shape = 's32[1]{0}', space=sflag, size = 0x4, scoped, tag = 'scoped memory for dqn_forward.1']
    #allocation9 [shape = 'u8[32768]{0}', space=vmem, size = 0x8000, scoped, tag = 'output window, operand 0, single buffered']
    %12 = vsyncpa [#allocation3], 0
    %13 = vsyncpa [#allocation5], 0
    %14 = vsyncpa [#allocation8], 0
    // Predicated region
    $region2: #{dqn_forward.1} parent=1 // pred_check
      _
    $region3: #{dqn_forward.1} parent=1 // pred_check_branch
      %16 = sbr.rel (0) target = $region5
    $region4: #{dqn_forward.1} parent=1 // pred_region
      %s18 = ssub.s32 2048, 128
      %19 = vsyncadd [#allocation3], %s18
      %s20 = sshll.u32 [#allocation2], 4
      %s21 = int_to_ptr.vmem [resolvable:$true] %s20
      %26 = dma.hbm_to_vmem [thread:$0]  %s0, 128, %s21, [#allocation3], 128, 128, 8
    $region5: #{dqn_forward.1} parent=1 // pred_fallthru
      _
    // Predicated region
    $region6: #{dqn_forward.1} parent=1 // pred_check
      _
    $region7: #{dqn_forward.1} parent=1 // pred_check_branch
      %28 = sbr.rel (0) target = $region9
    $region8: #{dqn_forward.1} parent=1 // pred_region
      %s30 = ssub.s32 128, 128
      %31 = vsyncadd [#allocation5], %s30
      %s32 = sshll.u32 [#allocation4], 4
      %s33 = int_to_ptr.vmem [resolvable:$true] %s32
      %38 = dma.hbm_to_vmem [thread:$0]  %s1, 128, %s33, [#allocation5], 64, 64, 4
    $region9: #{dqn_forward.1} parent=1 // pred_fallthru
      _
    // Predicated region
    $region10: #{dqn_forward.1} parent=1 // pred_check
      _
    $region11: #{dqn_forward.1} parent=1 // pred_check_branch
      %40 = sbr.rel (0) target = $region13
    $region12: #{dqn_forward.1} parent=1 // pred_region
      _
    $region13: #{dqn_forward.1} parent=1 // pred_fallthru
      _
    // Predicated region
    $region14: #{dqn_forward.1} parent=1 // pred_check
      _
    $region15: #{dqn_forward.1} parent=1 // pred_check_branch
      %42 = sbr.rel (0) target = $region17
    $region16: #{dqn_forward.1} parent=1 // pred_region
      %s44 = ssub.s32 1024, 1024
      %45 = vsyncadd [#allocation5], %s44
      %s46 = sshll.u32 [#allocation6], 4
      %s47 = int_to_ptr.vmem [resolvable:$true] %s46
      %52 = dma.hbm_to_vmem [thread:$0]  %s3, 1024, %s47, [#allocation5], 64, 64, 4
    $region17: #{dqn_forward.1} parent=1 // pred_fallthru
      _
    // Predicated region
    $region18: #{dqn_forward.1} parent=1 // pred_check
      _
    $region19: #{dqn_forward.1} parent=1 // pred_check_branch
      %54 = sbr.rel (0) target = $region21
    $region20: #{dqn_forward.1} parent=1 // pred_region
      _
    $region21: #{dqn_forward.1} parent=1 // pred_fallthru
      _
    // Predicated region
    $region22: #{dqn_forward.1} parent=1 // pred_check
      _
    $region23: #{dqn_forward.1} parent=1 // pred_check_branch
      %56 = sbr.rel (0) target = $region25
    $region24: #{dqn_forward.1} parent=1 // pred_region
      %s58 = ssub.s32 1024, 1024
      %59 = vsyncadd [#allocation8], %s58
      %s60 = sshll.u32 [#allocation7], 4
      %s61 = int_to_ptr.vmem [resolvable:$true] %s60
      %66 = dma.hbm_to_vmem [thread:$0]  %s5, 1024, %s61, [#allocation8], 64, 64, 4
    $region25: #{dqn_forward.1} parent=1 // pred_fallthru
      _
    // Predicated region
    $region26: #{dqn_forward.1} parent=1 // pred_check
      _
    $region27: #{dqn_forward.1} parent=1 // pred_check_branch
      %68 = sbr.rel (0) target = $region29
    $region28: #{dqn_forward.1} parent=1 // pred_region
      _
    $region29: #{dqn_forward.1} parent=1 // pred_fallthru
      _
    // Predicated region
    $region30: #{dqn_forward.1} parent=1 // pred_check
      _
    $region31: #{dqn_forward.1} parent=1 // pred_check_branch
      %70 = sbr.rel (0) target = $region33
    $region32: #{dqn_forward.1} parent=1 // pred_region
      %71 = dma.done [#allocation3], 2048
    $region33: #{dqn_forward.1} parent=1 // pred_fallthru
      _
    // Predicated region
    $region34: #{dqn_forward.1} parent=1 // pred_check
      _
    $region35: #{dqn_forward.1} parent=1 // pred_check_branch
      %73 = sbr.rel (0) target = $region37
    $region36: #{dqn_forward.1} parent=1 // pred_region
      %74 = dma.done [#allocation5], 128
    $region37: #{dqn_forward.1} parent=1 // pred_fallthru
      _
    // Predicated region
    $region38: #{dqn_forward.1} parent=1 // pred_check
      _
    $region39: #{dqn_forward.1} parent=1 // pred_check_branch
      %76 = sbr.rel (0) target = $region41
    $region40: #{dqn_forward.1} parent=1 // pred_region
      %77 = dma.done [#allocation5], 1024
    $region41: #{dqn_forward.1} parent=1 // pred_fallthru
      _
    // Predicated region
    $region42: #{dqn_forward.1} parent=1 // pred_check
      _
    $region43: #{dqn_forward.1} parent=1 // pred_check_branch
      %79 = sbr.rel (0) target = $region45
    $region44: #{dqn_forward.1} parent=1 // pred_region
      %80 = dma.done [#allocation8], 1024
    $region45: #{dqn_forward.1} parent=1 // pred_fallthru
      _
    %v82 = vld [vmem:[#allocation2] sm:$0xff]
    %v83 = vld [vmem:[#allocation2 + $0x8] sm:$0xff]
    %v84 = vld [vmem:[#allocation2 + $0x10] sm:$0xff]
    %v85 = vld [vmem:[#allocation2 + $0x18] sm:$0xff]
    %v86 = vld [vmem:[#allocation2 + $0x20] sm:$0xff]
    %v87 = vld [vmem:[#allocation2 + $0x28] sm:$0xff]
    %v88 = vld [vmem:[#allocation2 + $0x30] sm:$0xff]
    %v89 = vld [vmem:[#allocation2 + $0x38] sm:$0xff]
    %v90 = vld [vmem:[#allocation2 + $0x40] sm:$0xff]
    %v91 = vld [vmem:[#allocation2 + $0x48] sm:$0xff]
    %v92 = vld [vmem:[#allocation2 + $0x50] sm:$0xff]
    %v93 = vld [vmem:[#allocation2 + $0x58] sm:$0xff]
    %v94 = vld [vmem:[#allocation2 + $0x60] sm:$0xff]
    %v95 = vld [vmem:[#allocation2 + $0x68] sm:$0xff]
    %v96 = vld [vmem:[#allocation2 + $0x70] sm:$0xff]
    %v97 = vld [vmem:[#allocation2 + $0x78] sm:$0xff]
    %v98 = vpack.c.bf16 %v83, %v82
    %v99 = vpack.c.bf16 %v85, %v84
    %v100 = vpack.c.bf16 %v87, %v86
    %v101 = vpack.c.bf16 %v89, %v88
    %v102 = vpack.c.bf16 %v91, %v90
    %v103 = vpack.c.bf16 %v93, %v92
    %v104 = vpack.c.bf16 %v95, %v94
    %v105 = vpack.c.bf16 %v97, %v96
    %v106 = vld [vmem:[#allocation4] sm:$0xf]
    %v107 = vld [vmem:[#allocation4 + $0x4] sm:$0xf]
    %v108 = vld [vmem:[%s2] sm:$0x1]
    %v110 = vlaneseq
    %v111 = vshrl.u32 %v110, 7
    %v112 = vsub.s32 0, %v111
    %v113 = vrot.slane %v108, %v112
    %v117 = vunpack.c.l.b16 %v106
    %v118 = vunpack.c.l.b16 %v107
    %v119 = vpack.c.b16 %v118, %v117
    %vm121 = vcmask 130048
    %v123 = vsel %vm121, %v98, 0
    %v126 = vsel %vm121, %v99, 0
    %v129 = vsel %vm121, %v100, 0
    %v132 = vsel %vm121, %v101, 0
    %v135 = vsel %vm121, %v102, 0
    %v138 = vsel %vm121, %v103, 0
    %v141 = vsel %vm121, %v104, 0
    %v144 = vsel %vm121, %v105, 0
    %146 = vmatprep.subr.bf16.mxu0 0
    %147 = vmatpush1.bf16.msra.mxu0 0
    %148 = vmatprep.subr.bf16.mxu0 0
    %149 = vmatpush1.bf16.msra.mxu0 0
    %150 = vmatprep.subr.bf16.mxu0 0
    %151 = vmatpush1.bf16.msra.mxu0 0
    %152 = vmatprep.subr.bf16.mxu0 0
    %153 = vmatpush1.bf16.msra.mxu0 0
    %154 = vmatprep.subr.bf16.mxu0 0
    %155 = vmatpush1.bf16.msra.mxu0 0
    %156 = vmatprep.subr.bf16.mxu0 0
    %157 = vmatpush1.bf16.msra.mxu0 0
    %158 = vmatprep.subr.bf16.mxu0 0
    %159 = vmatpush1.bf16.msra.mxu0 0
    %160 = vmatprep.subr.bf16.mxu0 0
    %161 = vmatpush1.bf16.msra.mxu0 %v119
    %162 = vmatprep.subr.bf16.mxu0 0
    %163 = vmatpush2.bf16.msra.mxu0 0
    %164 = vmatprep.subr.bf16.mxu0 0
    %165 = vmatpush2.bf16.msra.mxu0 0
    %166 = vmatprep.subr.bf16.mxu0 0
    %167 = vmatpush2.bf16.msra.mxu0 0
    %168 = vmatprep.subr.bf16.mxu0 0
    %169 = vmatpush2.bf16.msra.mxu0 0
    %170 = vmatprep.subr.bf16.mxu0 0
    %171 = vmatpush2.bf16.msra.mxu0 0
    %172 = vmatprep.subr.bf16.mxu0 0
    %173 = vmatpush2.bf16.msra.mxu0 0
    %174 = vmatprep.subr.bf16.mxu0 0
    %175 = vmatpush2.bf16.msra.mxu0 0
    %176 = vmatprep.subr.bf16.mxu0 0
    %177 = vmatpush2.bf16.msra.mxu0 0
    %178 = vmatprep.mubr.bf16.mxu0 0
    %179 = vmatmul.mubr.bf16.gmra.mxu0 %v123
    %v180 = vpop.f32.mrf.mxu0
    %v181 = vadd.f32 %v113, %v180
    %v182 = vpop.f32.mrf.mxu0
    %v183 = vpop.f32.mrf.mxu0
    %v184 = vadd.f32 %v113, %v183
    %v185 = vpop.f32.mrf.mxu0
    %186 = vmatprep.mubr.bf16.mxu0 0
    %187 = vmatmul.mubr.bf16.gmra.mxu0 %v126
    %v188 = vpop.f32.mrf.mxu0
    %v189 = vadd.f32 %v113, %v188
    %v190 = vpop.f32.mrf.mxu0
    %v191 = vpop.f32.mrf.mxu0
    %v192 = vadd.f32 %v113, %v191
    %v193 = vpop.f32.mrf.mxu0
    %194 = vmatprep.mubr.bf16.mxu0 0
    %195 = vmatmul.mubr.bf16.gmra.mxu0 %v129
    %v196 = vpop.f32.mrf.mxu0
    %v197 = vadd.f32 %v113, %v196
    %v198 = vpop.f32.mrf.mxu0
    %v199 = vpop.f32.mrf.mxu0
    %v200 = vadd.f32 %v113, %v199
    %v201 = vpop.f32.mrf.mxu0
    %202 = vmatprep.mubr.bf16.mxu0 0
    %203 = vmatmul.mubr.bf16.gmra.mxu0 %v132
    %v204 = vpop.f32.mrf.mxu0
    %v205 = vadd.f32 %v113, %v204
    %v206 = vpop.f32.mrf.mxu0
    %v207 = vpop.f32.mrf.mxu0
    %v208 = vadd.f32 %v113, %v207
    %v209 = vpop.f32.mrf.mxu0
    %210 = vmatprep.mubr.bf16.mxu0 0
    %211 = vmatmul.mubr.bf16.gmra.mxu0 %v135
    %v212 = vpop.f32.mrf.mxu0
    %v213 = vadd.f32 %v113, %v212
    %v214 = vpop.f32.mrf.mxu0
    %v215 = vpop.f32.mrf.mxu0
    %v216 = vadd.f32 %v113, %v215
    %v217 = vpop.f32.mrf.mxu0
    %218 = vmatprep.mubr.bf16.mxu0 0
    %219 = vmatmul.mubr.bf16.gmra.mxu0 %v138
    %v220 = vpop.f32.mrf.mxu0
    %v221 = vadd.f32 %v113, %v220
    %v222 = vpop.f32.mrf.mxu0
    %v223 = vpop.f32.mrf.mxu0
    %v224 = vadd.f32 %v113, %v223
    %v225 = vpop.f32.mrf.mxu0
    %226 = vmatprep.mubr.bf16.mxu0 0
    %227 = vmatmul.mubr.bf16.gmra.mxu0 %v141
    %v228 = vpop.f32.mrf.mxu0
    %v229 = vadd.f32 %v113, %v228
    %v230 = vpop.f32.mrf.mxu0
    %v231 = vpop.f32.mrf.mxu0
    %v232 = vadd.f32 %v113, %v231
    %v233 = vpop.f32.mrf.mxu0
    %234 = vmatprep.mubr.bf16.mxu0 0
    %235 = vmatmul.mubr.bf16.gmra.mxu0 %v144
    %v236 = vpop.f32.mrf.mxu0
    %v237 = vadd.f32 %v113, %v236
    %v238 = vpop.f32.mrf.mxu0
    %v239 = vpop.f32.mrf.mxu0
    %v240 = vadd.f32 %v113, %v239
    %v241 = vpop.f32.mrf.mxu0
    %242 = vdwg.mxu0
    %v243 = vmax.f32 %v181, 0.0
    %v244 = vmax.f32 %v184, 0.0
    %v245 = vmax.f32 %v189, 0.0
    %v246 = vmax.f32 %v192, 0.0
    %v247 = vmax.f32 %v197, 0.0
    %v248 = vmax.f32 %v200, 0.0
    %v249 = vmax.f32 %v205, 0.0
    %v250 = vmax.f32 %v208, 0.0
    %v251 = vmax.f32 %v213, 0.0
    %v252 = vmax.f32 %v216, 0.0
    %v253 = vmax.f32 %v221, 0.0
    %v254 = vmax.f32 %v224, 0.0
    %v255 = vmax.f32 %v229, 0.0
    %v256 = vmax.f32 %v232, 0.0
    %v257 = vmax.f32 %v237, 0.0
    %v258 = vmax.f32 %v240, 0.0
    %v259 = vpack.c.bf16 %v244, %v243
    %v260 = vpack.c.bf16 %v246, %v245
    %v261 = vpack.c.bf16 %v248, %v247
    %v262 = vpack.c.bf16 %v250, %v249
    %v263 = vpack.c.bf16 %v252, %v251
    %v264 = vpack.c.bf16 %v254, %v253
    %v265 = vpack.c.bf16 %v256, %v255
    %v266 = vpack.c.bf16 %v258, %v257
    %v267 = vld [vmem:[#allocation6] sm:$0xf]
    %v268 = vld [vmem:[#allocation6 + $0x4] sm:$0xf]
    %v269 = vld [vmem:[#allocation6 + $0x8] sm:$0xf]
    %v270 = vld [vmem:[#allocation6 + $0xc] sm:$0xf]
    %v271 = vld [vmem:[#allocation6 + $0x10] sm:$0xf]
    %v272 = vld [vmem:[#allocation6 + $0x14] sm:$0xf]
    %v273 = vld [vmem:[#allocation6 + $0x18] sm:$0xf]
    %v274 = vld [vmem:[#allocation6 + $0x1c] sm:$0xf]
    %v275 = vld [vmem:[#allocation6 + $0x20] sm:$0xf]
    %v276 = vld [vmem:[#allocation6 + $0x24] sm:$0xf]
    %v277 = vld [vmem:[#allocation6 + $0x28] sm:$0xf]
    %v278 = vld [vmem:[#allocation6 + $0x2c] sm:$0xf]
    %v279 = vld [vmem:[#allocation6 + $0x30] sm:$0xf]
    %v280 = vld [vmem:[#allocation6 + $0x34] sm:$0xf]
    %v281 = vld [vmem:[#allocation6 + $0x38] sm:$0xf]
    %v282 = vld [vmem:[#allocation6 + $0x3c] sm:$0xf]
    %v283 = vld [vmem:[%s4] sm:$0x1]
    %v285 = vlaneseq
    %v286 = vshrl.u32 %v285, 7
    %v287 = vsub.s32 0, %v286
    %v288 = vrot.slane %v283, %v287
    %v306 = vunpack.c.l.b16 %v267
    %v307 = vunpack.c.l.b16 %v268
    %v308 = vunpack.c.l.b16 %v269
    %v309 = vunpack.c.l.b16 %v270
    %v310 = vunpack.c.l.b16 %v271
    %v311 = vunpack.c.l.b16 %v272
    %v312 = vunpack.c.l.b16 %v273
    %v313 = vunpack.c.l.b16 %v274
    %v314 = vunpack.c.l.b16 %v275
    %v315 = vunpack.c.l.b16 %v276
    %v316 = vunpack.c.l.b16 %v277
    %v317 = vunpack.c.l.b16 %v278
    %v318 = vunpack.c.l.b16 %v279
    %v319 = vunpack.c.l.b16 %v280
    %v320 = vunpack.c.l.b16 %v281
    %v321 = vunpack.c.l.b16 %v282
    %v322 = vpack.c.b16 %v307, %v306
    %v323 = vpack.c.b16 %v309, %v308
    %v324 = vpack.c.b16 %v311, %v310
    %v325 = vpack.c.b16 %v313, %v312
    %v326 = vpack.c.b16 %v315, %v314
    %v327 = vpack.c.b16 %v317, %v316
    %v328 = vpack.c.b16 %v319, %v318
    %v329 = vpack.c.b16 %v321, %v320
    %338 = vmatprep.subr.bf16.mxu0 0
    %339 = vmatpush1.bf16.msra.mxu0 %v329
    %340 = vmatprep.subr.bf16.mxu0 0
    %341 = vmatpush1.bf16.msra.mxu0 %v328
    %342 = vmatprep.subr.bf16.mxu0 0
    %343 = vmatpush1.bf16.msra.mxu0 %v327
    %344 = vmatprep.subr.bf16.mxu0 0
    %345 = vmatpush1.bf16.msra.mxu0 %v326
    %346 = vmatprep.subr.bf16.mxu0 0
    %347 = vmatpush1.bf16.msra.mxu0 %v325
    %348 = vmatprep.subr.bf16.mxu0 0
    %349 = vmatpush1.bf16.msra.mxu0 %v324
    %350 = vmatprep.subr.bf16.mxu0 0
    %351 = vmatpush1.bf16.msra.mxu0 %v323
    %352 = vmatprep.subr.bf16.mxu0 0
    %353 = vmatpush1.bf16.msra.mxu0 %v322
    %354 = vmatprep.subr.bf16.mxu0 0
    %355 = vmatpush2.bf16.msra.mxu0 0
    %356 = vmatprep.subr.bf16.mxu0 0
    %357 = vmatpush2.bf16.msra.mxu0 0
    %358 = vmatprep.subr.bf16.mxu0 0
    %359 = vmatpush2.bf16.msra.mxu0 0
    %360 = vmatprep.subr.bf16.mxu0 0
    %361 = vmatpush2.bf16.msra.mxu0 0
    %362 = vmatprep.subr.bf16.mxu0 0
    %363 = vmatpush2.bf16.msra.mxu0 0
    %364 = vmatprep.subr.bf16.mxu0 0
    %365 = vmatpush2.bf16.msra.mxu0 0
    %366 = vmatprep.subr.bf16.mxu0 0
    %367 = vmatpush2.bf16.msra.mxu0 0
    %368 = vmatprep.subr.bf16.mxu0 0
    %369 = vmatpush2.bf16.msra.mxu0 0
    %370 = vmatprep.mubr.bf16.mxu0 0
    %371 = vmatmul.mubr.bf16.gmra.mxu0 %v259
    %v372 = vpop.f32.mrf.mxu0
    %v373 = vadd.f32 %v288, %v372
    %v374 = vpop.f32.mrf.mxu0
    %v375 = vpop.f32.mrf.mxu0
    %v376 = vadd.f32 %v288, %v375
    %v377 = vpop.f32.mrf.mxu0
    %378 = vmatprep.mubr.bf16.mxu0 0
    %379 = vmatmul.mubr.bf16.gmra.mxu0 %v260
    %v380 = vpop.f32.mrf.mxu0
    %v381 = vadd.f32 %v288, %v380
    %v382 = vpop.f32.mrf.mxu0
    %v383 = vpop.f32.mrf.mxu0
    %v384 = vadd.f32 %v288, %v383
    %v385 = vpop.f32.mrf.mxu0
    %386 = vmatprep.mubr.bf16.mxu0 0
    %387 = vmatmul.mubr.bf16.gmra.mxu0 %v261
    %v388 = vpop.f32.mrf.mxu0
    %v389 = vadd.f32 %v288, %v388
    %v390 = vpop.f32.mrf.mxu0
    %v391 = vpop.f32.mrf.mxu0
    %v392 = vadd.f32 %v288, %v391
    %v393 = vpop.f32.mrf.mxu0
    %394 = vmatprep.mubr.bf16.mxu0 0
    %395 = vmatmul.mubr.bf16.gmra.mxu0 %v262
    %v396 = vpop.f32.mrf.mxu0
    %v397 = vadd.f32 %v288, %v396
    %v398 = vpop.f32.mrf.mxu0
    %v399 = vpop.f32.mrf.mxu0
    %v400 = vadd.f32 %v288, %v399
    %v401 = vpop.f32.mrf.mxu0
    %402 = vmatprep.mubr.bf16.mxu0 0
    %403 = vmatmul.mubr.bf16.gmra.mxu0 %v263
    %v404 = vpop.f32.mrf.mxu0
    %v405 = vadd.f32 %v288, %v404
    %v406 = vpop.f32.mrf.mxu0
    %v407 = vpop.f32.mrf.mxu0
    %v408 = vadd.f32 %v288, %v407
    %v409 = vpop.f32.mrf.mxu0
    %410 = vmatprep.mubr.bf16.mxu0 0
    %411 = vmatmul.mubr.bf16.gmra.mxu0 %v264
    %v412 = vpop.f32.mrf.mxu0
    %v413 = vadd.f32 %v288, %v412
    %v414 = vpop.f32.mrf.mxu0
    %v415 = vpop.f32.mrf.mxu0
    %v416 = vadd.f32 %v288, %v415
    %v417 = vpop.f32.mrf.mxu0
    %418 = vmatprep.mubr.bf16.mxu0 0
    %419 = vmatmul.mubr.bf16.gmra.mxu0 %v265
    %v420 = vpop.f32.mrf.mxu0
    %v421 = vadd.f32 %v288, %v420
    %v422 = vpop.f32.mrf.mxu0
    %v423 = vpop.f32.mrf.mxu0
    %v424 = vadd.f32 %v288, %v423
    %v425 = vpop.f32.mrf.mxu0
    %426 = vmatprep.mubr.bf16.mxu0 0
    %427 = vmatmul.mubr.bf16.gmra.mxu0 %v266
    %v428 = vpop.f32.mrf.mxu0
    %v429 = vadd.f32 %v288, %v428
    %v430 = vpop.f32.mrf.mxu0
    %v431 = vpop.f32.mrf.mxu0
    %v432 = vadd.f32 %v288, %v431
    %v433 = vpop.f32.mrf.mxu0
    %434 = vdwg.mxu0
    %v435 = vmax.f32 %v373, 0.0
    %v436 = vmax.f32 %v376, 0.0
    %v437 = vmax.f32 %v381, 0.0
    %v438 = vmax.f32 %v384, 0.0
    %v439 = vmax.f32 %v389, 0.0
    %v440 = vmax.f32 %v392, 0.0
    %v441 = vmax.f32 %v397, 0.0
    %v442 = vmax.f32 %v400, 0.0
    %v443 = vmax.f32 %v405, 0.0
    %v444 = vmax.f32 %v408, 0.0
    %v445 = vmax.f32 %v413, 0.0
    %v446 = vmax.f32 %v416, 0.0
    %v447 = vmax.f32 %v421, 0.0
    %v448 = vmax.f32 %v424, 0.0
    %v449 = vmax.f32 %v429, 0.0
    %v450 = vmax.f32 %v432, 0.0
    %v451 = vpack.c.bf16 %v436, %v435
    %v452 = vpack.c.bf16 %v438, %v437
    %v453 = vpack.c.bf16 %v440, %v439
    %v454 = vpack.c.bf16 %v442, %v441
    %v455 = vpack.c.bf16 %v444, %v443
    %v456 = vpack.c.bf16 %v446, %v445
    %v457 = vpack.c.bf16 %v448, %v447
    %v458 = vpack.c.bf16 %v450, %v449
    %v459 = vld [vmem:[#allocation7] sm:$0xf]
    %v460 = vld [vmem:[#allocation7 + $0x4] sm:$0xf]
    %v461 = vld [vmem:[#allocation7 + $0x8] sm:$0xf]
    %v462 = vld [vmem:[#allocation7 + $0xc] sm:$0xf]
    %v463 = vld [vmem:[#allocation7 + $0x10] sm:$0xf]
    %v464 = vld [vmem:[#allocation7 + $0x14] sm:$0xf]
    %v465 = vld [vmem:[#allocation7 + $0x18] sm:$0xf]
    %v466 = vld [vmem:[#allocation7 + $0x1c] sm:$0xf]
    %v467 = vld [vmem:[#allocation7 + $0x20] sm:$0xf]
    %v468 = vld [vmem:[#allocation7 + $0x24] sm:$0xf]
    %v469 = vld [vmem:[#allocation7 + $0x28] sm:$0xf]
    %v470 = vld [vmem:[#allocation7 + $0x2c] sm:$0xf]
    %v471 = vld [vmem:[#allocation7 + $0x30] sm:$0xf]
    %v472 = vld [vmem:[#allocation7 + $0x34] sm:$0xf]
    %v473 = vld [vmem:[#allocation7 + $0x38] sm:$0xf]
    %v474 = vld [vmem:[#allocation7 + $0x3c] sm:$0xf]
    %v475 = vld [vmem:[%s6] sm:$0x1]
    %v477 = vlaneseq
    %v478 = vshrl.u32 %v477, 7
    %v479 = vsub.s32 0, %v478
    %v480 = vrot.slane %v475, %v479
    %v498 = vunpack.c.l.b16 %v459
    %v499 = vunpack.c.l.b16 %v460
    %v500 = vunpack.c.l.b16 %v461
    %v501 = vunpack.c.l.b16 %v462
    %v502 = vunpack.c.l.b16 %v463
    %v503 = vunpack.c.l.b16 %v464
    %v504 = vunpack.c.l.b16 %v465
    %v505 = vunpack.c.l.b16 %v466
    %v506 = vunpack.c.l.b16 %v467
    %v507 = vunpack.c.l.b16 %v468
    %v508 = vunpack.c.l.b16 %v469
    %v509 = vunpack.c.l.b16 %v470
    %v510 = vunpack.c.l.b16 %v471
    %v511 = vunpack.c.l.b16 %v472
    %v512 = vunpack.c.l.b16 %v473
    %v513 = vunpack.c.l.b16 %v474
    %v514 = vpack.c.b16 %v499, %v498
    %v515 = vpack.c.b16 %v501, %v500
    %v516 = vpack.c.b16 %v503, %v502
    %v517 = vpack.c.b16 %v505, %v504
    %v518 = vpack.c.b16 %v507, %v506
    %v519 = vpack.c.b16 %v509, %v508
    %v520 = vpack.c.b16 %v511, %v510
    %v521 = vpack.c.b16 %v513, %v512
    %530 = vmatprep.subr.bf16.mxu0 0
    %531 = vmatpush1.bf16.msra.mxu0 %v521
    %532 = vmatprep.subr.bf16.mxu0 0
    %533 = vmatpush1.bf16.msra.mxu0 %v520
    %534 = vmatprep.subr.bf16.mxu0 0
    %535 = vmatpush1.bf16.msra.mxu0 %v519
    %536 = vmatprep.subr.bf16.mxu0 0
    %537 = vmatpush1.bf16.msra.mxu0 %v518
    %538 = vmatprep.subr.bf16.mxu0 0
    %539 = vmatpush1.bf16.msra.mxu0 %v517
    %540 = vmatprep.subr.bf16.mxu0 0
    %541 = vmatpush1.bf16.msra.mxu0 %v516
    %542 = vmatprep.subr.bf16.mxu0 0
    %543 = vmatpush1.bf16.msra.mxu0 %v515
    %544 = vmatprep.subr.bf16.mxu0 0
    %545 = vmatpush1.bf16.msra.mxu0 %v514
    %546 = vmatprep.subr.bf16.mxu0 0
    %547 = vmatpush2.bf16.msra.mxu0 0
    %548 = vmatprep.subr.bf16.mxu0 0
    %549 = vmatpush2.bf16.msra.mxu0 0
    %550 = vmatprep.subr.bf16.mxu0 0
    %551 = vmatpush2.bf16.msra.mxu0 0
    %552 = vmatprep.subr.bf16.mxu0 0
    %553 = vmatpush2.bf16.msra.mxu0 0
    %554 = vmatprep.subr.bf16.mxu0 0
    %555 = vmatpush2.bf16.msra.mxu0 0
    %556 = vmatprep.subr.bf16.mxu0 0
    %557 = vmatpush2.bf16.msra.mxu0 0
    %558 = vmatprep.subr.bf16.mxu0 0
    %559 = vmatpush2.bf16.msra.mxu0 0
    %560 = vmatprep.subr.bf16.mxu0 0
    %561 = vmatpush2.bf16.msra.mxu0 0
    %562 = vmatprep.mubr.bf16.mxu0 0
    %563 = vmatmul.mubr.bf16.gmra.mxu0 %v451
    %v564 = vpop.f32.mrf.mxu0
    %v565 = vadd.f32 %v480, %v564
    %v566 = vpop.f32.mrf.mxu0
    %v567 = vpop.f32.mrf.mxu0
    %v568 = vadd.f32 %v480, %v567
    %v569 = vpop.f32.mrf.mxu0
    %570 = vmatprep.mubr.bf16.mxu0 0
    %571 = vmatmul.mubr.bf16.gmra.mxu0 %v452
    %v572 = vpop.f32.mrf.mxu0
    %v573 = vadd.f32 %v480, %v572
    %v574 = vpop.f32.mrf.mxu0
    %v575 = vpop.f32.mrf.mxu0
    %v576 = vadd.f32 %v480, %v575
    %v577 = vpop.f32.mrf.mxu0
    %578 = vmatprep.mubr.bf16.mxu0 0
    %579 = vmatmul.mubr.bf16.gmra.mxu0 %v453
    %v580 = vpop.f32.mrf.mxu0
    %v581 = vadd.f32 %v480, %v580
    %v582 = vpop.f32.mrf.mxu0
    %v583 = vpop.f32.mrf.mxu0
    %v584 = vadd.f32 %v480, %v583
    %v585 = vpop.f32.mrf.mxu0
    %586 = vmatprep.mubr.bf16.mxu0 0
    %587 = vmatmul.mubr.bf16.gmra.mxu0 %v454
    %v588 = vpop.f32.mrf.mxu0
    %v589 = vadd.f32 %v480, %v588
    %v590 = vpop.f32.mrf.mxu0
    %v591 = vpop.f32.mrf.mxu0
    %v592 = vadd.f32 %v480, %v591
    %v593 = vpop.f32.mrf.mxu0
    %594 = vmatprep.mubr.bf16.mxu0 0
    %595 = vmatmul.mubr.bf16.gmra.mxu0 %v455
    %v596 = vpop.f32.mrf.mxu0
    %v597 = vadd.f32 %v480, %v596
    %v598 = vpop.f32.mrf.mxu0
    %v599 = vpop.f32.mrf.mxu0
    %v600 = vadd.f32 %v480, %v599
    %v601 = vpop.f32.mrf.mxu0
    %602 = vmatprep.mubr.bf16.mxu0 0
    %603 = vmatmul.mubr.bf16.gmra.mxu0 %v456
    %v604 = vpop.f32.mrf.mxu0
    %v605 = vadd.f32 %v480, %v604
    %v606 = vpop.f32.mrf.mxu0
    %v607 = vpop.f32.mrf.mxu0
    %v608 = vadd.f32 %v480, %v607
    %v609 = vpop.f32.mrf.mxu0
    %610 = vmatprep.mubr.bf16.mxu0 0
    %611 = vmatmul.mubr.bf16.gmra.mxu0 %v457
    %v612 = vpop.f32.mrf.mxu0
    %v613 = vadd.f32 %v480, %v612
    %v614 = vpop.f32.mrf.mxu0
    %v615 = vpop.f32.mrf.mxu0
    %v616 = vadd.f32 %v480, %v615
    %v617 = vpop.f32.mrf.mxu0
    %618 = vmatprep.mubr.bf16.mxu0 0
    %619 = vmatmul.mubr.bf16.gmra.mxu0 %v458
    %v620 = vpop.f32.mrf.mxu0
    %v621 = vadd.f32 %v480, %v620
    %v622 = vpop.f32.mrf.mxu0
    %v623 = vpop.f32.mrf.mxu0
    %v624 = vadd.f32 %v480, %v623
    %v625 = vpop.f32.mrf.mxu0
    %626 = vdwg.mxu0
    %v627 = vpack.c.bf16 %v568, %v565
    %v628 = vpack.c.bf16 %v576, %v573
    %v629 = vpack.c.bf16 %v584, %v581
    %v630 = vpack.c.bf16 %v592, %v589
    %v631 = vpack.c.bf16 %v600, %v597
    %v632 = vpack.c.bf16 %v608, %v605
    %v633 = vpack.c.bf16 %v616, %v613
    %v634 = vpack.c.bf16 %v624, %v621
    %v643 = vunpack.c.l.b16 %v627
    %v644 = vunpack.c.h.b16 %v627
    %v645 = vunpack.c.l.b16 %v628
    %v646 = vunpack.c.h.b16 %v628
    %v647 = vunpack.c.l.b16 %v629
    %v648 = vunpack.c.h.b16 %v629
    %v649 = vunpack.c.l.b16 %v630
    %v650 = vunpack.c.h.b16 %v630
    %v651 = vunpack.c.l.b16 %v631
    %v652 = vunpack.c.h.b16 %v631
    %v653 = vunpack.c.l.b16 %v632
    %v654 = vunpack.c.h.b16 %v632
    %v655 = vunpack.c.l.b16 %v633
    %v656 = vunpack.c.h.b16 %v633
    %v657 = vunpack.c.l.b16 %v634
    %v658 = vunpack.c.h.b16 %v634
    %v659 = vpack.c.b16 %v643, %v643
    %v660 = vpack.c.b16 %v644, %v644
    %v661 = vpack.c.b16 %v645, %v645
    %v662 = vpack.c.b16 %v646, %v646
    %v663 = vpack.c.b16 %v647, %v647
    %v664 = vpack.c.b16 %v648, %v648
    %v665 = vpack.c.b16 %v649, %v649
    %v666 = vpack.c.b16 %v650, %v650
    %v667 = vpack.c.b16 %v651, %v651
    %v668 = vpack.c.b16 %v652, %v652
    %v669 = vpack.c.b16 %v653, %v653
    %v670 = vpack.c.b16 %v654, %v654
    %v671 = vpack.c.b16 %v655, %v655
    %v672 = vpack.c.b16 %v656, %v656
    %v673 = vpack.c.b16 %v657, %v657
    %v674 = vpack.c.b16 %v658, %v658
    %691 = vst [vmem:[#allocation9] sm:$0xf] %v659
    %692 = vst [vmem:[#allocation9 + $0x4] sm:$0xf] %v660
    %693 = vst [vmem:[#allocation9 + $0x8] sm:$0xf] %v661
    %694 = vst [vmem:[#allocation9 + $0xc] sm:$0xf] %v662
    %695 = vst [vmem:[#allocation9 + $0x10] sm:$0xf] %v663
    %696 = vst [vmem:[#allocation9 + $0x14] sm:$0xf] %v664
    %697 = vst [vmem:[#allocation9 + $0x18] sm:$0xf] %v665
    %698 = vst [vmem:[#allocation9 + $0x1c] sm:$0xf] %v666
    %699 = vst [vmem:[#allocation9 + $0x20] sm:$0xf] %v667
    %700 = vst [vmem:[#allocation9 + $0x24] sm:$0xf] %v668
    %701 = vst [vmem:[#allocation9 + $0x28] sm:$0xf] %v669
    %702 = vst [vmem:[#allocation9 + $0x2c] sm:$0xf] %v670
    %703 = vst [vmem:[#allocation9 + $0x30] sm:$0xf] %v671
    %704 = vst [vmem:[#allocation9 + $0x34] sm:$0xf] %v672
    %705 = vst [vmem:[#allocation9 + $0x38] sm:$0xf] %v673
    %706 = vst [vmem:[#allocation9 + $0x3c] sm:$0xf] %v674
    // Predicated region
    $region46: #{dqn_forward.1} parent=1 // pred_check
      _
    $region47: #{dqn_forward.1} parent=1 // pred_check_branch
      %708 = sbr.rel (0) target = $region49
    $region48: #{dqn_forward.1} parent=1 // pred_region
      // Predicated region
      $region50: #{dqn_forward.1} parent=48 // pred_check
        _
      $region51: #{dqn_forward.1} parent=48 // pred_check_branch
        %710 = sbr.rel (0) target = $region53
      $region52: #{dqn_forward.1} parent=48 // pred_region
        // Predicated region
        $region54: #{dqn_forward.1} parent=52 // pred_check
          _
        $region55: #{dqn_forward.1} parent=52 // pred_check_branch
          %712 = sbr.rel target = $region57
        $region56: #{dqn_forward.1} parent=52 // pred_region
          // Predicated region
          $region69: #{dqn_forward.1} parent=56 // pred_check
            _
          $region70: #{dqn_forward.1} parent=56 // pred_check_branch
            %728 = sbr.rel (0) target = $region72
          $region71: #{dqn_forward.1} parent=56 // pred_region
            %s730 = ssub.s32 16, 1
            loop: start=0, step=1, limit=1
            $region73: #{dqn_forward.1} parent=71 // loop_pre_header
              _
            $region74: #{dqn_forward.1} parent=71 // loop_header
              %s732 = sphi 0, %s736
              %p733 = scmp.ge.s32.totalorder %s732, 1
              %s737 = sphi [#allocation9], [#allocation9]
              %s738 = sphi %s7, %s7
            $region75: #{dqn_forward.1} parent=71 // loop_header_branch
              %735 = sbr.rel (%p733) target = $region79
            $region76: #{dqn_forward.1} parent=71 // loop_body
              %v739 = vld [vmem:[%s737] sm:%s730]
              %740 = vst [vmem:[%s738] sm:%s730] %v739
            $region77: #{dqn_forward.1} parent=71 // loop_footer
              %s736 = sadd.s32 1, %s732
            $region78: #{dqn_forward.1} parent=71 // loop_footer_branch
              %731 = sbr.rel target = $region74
            $region79: #{dqn_forward.1} parent=71 // loop_exit
              _
          $region72: #{dqn_forward.1} parent=56 // pred_fallthru
            _
        $region57: #{dqn_forward.1} parent=52 // pred_fallthru
          _
        // Predicated region
        $region58: #{dqn_forward.1} parent=52 // pred_check
          _
        $region59: #{dqn_forward.1} parent=52 // pred_check_branch
          %714 = sbr.rel (0) target = $region61
        $region60: #{dqn_forward.1} parent=52 // pred_region
          %s716 = ssub.s32 16, 1
          loop: start=0, step=1, limit=1
          $region62: #{dqn_forward.1} parent=60 // loop_pre_header
            _
          $region63: #{dqn_forward.1} parent=60 // loop_header
            %s718 = sphi 0, %s722
            %p719 = scmp.ge.s32.totalorder %s718, 1
            %s723 = sphi [#allocation9], [#allocation9]
            %s724 = sphi %s7, %s7
          $region64: #{dqn_forward.1} parent=60 // loop_header_branch
            %721 = sbr.rel (%p719) target = $region68
          $region65: #{dqn_forward.1} parent=60 // loop_body
            %v725 = vld [vmem:[%s723] sm:%s716]
            %726 = vst [vmem:[%s724] sm:%s716] %v725
          $region66: #{dqn_forward.1} parent=60 // loop_footer
            %s722 = sadd.s32 1, %s718
          $region67: #{dqn_forward.1} parent=60 // loop_footer_branch
            %717 = sbr.rel target = $region63
          $region68: #{dqn_forward.1} parent=60 // loop_exit
            _
        $region61: #{dqn_forward.1} parent=52 // pred_fallthru
          _
      $region53: #{dqn_forward.1} parent=48 // pred_fallthru
        _
      %741 = vnop
    $region49: #{dqn_forward.1} parent=1 // pred_fallthru
      _
    // Predicated region
    $region80: #{dqn_forward.1} parent=1 // pred_check
      _
    $region81: #{dqn_forward.1} parent=1 // pred_check_branch
      %743 = sbr.rel (0) target = $region83
    $region82: #{dqn_forward.1} parent=1 // pred_region
      _
    $region83: #{dqn_forward.1} parent=1 // pred_fallthru
      _
    %744 = vsyncpa [#allocation3], 1
    %745 = vsyncpa [#allocation5], 1
    %746 = vsyncpa [#allocation8], 1

</llo_original>
